<compile_context>
chip_gen: v5e
topology: v5e:2x2
jax: 0.10.0
libtpu: 0.0.40
codegen_flags: <defaults>
</compile_context>

<pallas_src>
import numpy as np

import jax
import jax.numpy as jnp
from jax.experimental import pallas as pl
from jax.experimental.pallas import tpu as pltpu


def _round_up(x: int, m: int) -> int:
    return ((x + m - 1) // m) * m


def _moving_avg_matrix(seq_len: int, kernel_size: int) -> np.ndarray:
    """A[t, s] so that (A @ x) == replicate-padded moving average of x (stride 1)."""
    pad = (kernel_size - 1) // 2
    A = np.zeros((seq_len, seq_len), dtype=np.float32)
    for t in range(seq_len):
        for j in range(kernel_size):
            s = min(max(t + j - pad, 0), seq_len - 1)
            A[t, s] += 1.0 / kernel_size
    return A


def _gated_mlp_kernel(
    x_ref,       # (Bt, S*F)   batch tile of the input, flattened (seq, feat)
    wproj_ref,   # (S*F, S)    kron(I_S, w_in): per-timestep F->1 projection
    at_ref,      # (S, S)      moving-average matrix, transposed (trend = y @ A^T)
    wg_ref,      # (S, S)      input_gate weight
    wt1_ref,     # (S, H)      trend_mlp layer 0 weight
    wr1_ref,     # (S, H)      residual_mlp layer 0 weight
    wt2_ref,     # (H, OUT_W)  trend_mlp layer 1 weight, in columns [0:H]
    wr2_ref,     # (H, OUT_W)  residual_mlp layer 1 weight, in columns [H:2H]
    bias_ref,    # (8, PW)     packed biases (gate / t1 / r1 / layer-1 / b_in)
    out_ref,     # (Bt, OUT_W) trend in [:, :H], residual in [:, H:2H]
):
    S = at_ref.shape[0]
    H = wt1_ref.shape[1]
    OUT_W = out_ref.shape[1]

    x = x_ref[...]                                                           # (Bt, S*F)

    # Linear(F -> 1) applied per timestep, BEFORE the decomposition (linear ops
    # commute with the moving average).  y[b, s] = sum_f x[b, s, f] * w_in[f].
    y = jnp.dot(x, wproj_ref[...], preferred_element_type=jnp.float32)       # (Bt, S)

    # series_decomp: trend = replicate-padded moving average, residual = y - trend
    trend = jnp.dot(y, at_ref[...], preferred_element_type=jnp.float32)      # (Bt, S)
    resid = y - trend

    b_in = bias_ref[4:5, 0:1]                                                # (1, 1)
    t1 = trend + b_in                                                        # (Bt, S)
    r1 = resid + b_in

    # input_gate: Linear(S -> S) + Sigmoid, then elementwise gating.
    wg = wg_ref[...]
    bg = bias_ref[0:1, 0:S]                                                  # (1, S)
    gate_t = jax.nn.sigmoid(jnp.dot(t1, wg, preferred_element_type=jnp.float32) + bg)
    gate_r = jax.nn.sigmoid(jnp.dot(r1, wg, preferred_element_type=jnp.float32) + bg)
    t_g = t1 * gate_t
    r_g = r1 * gate_r

    # First MLP layers: Linear(S -> H) (no activation in the reference module).
    bt1 = bias_ref[1:2, 0:H]
    br1 = bias_ref[2:3, 0:H]
    t_h = jnp.dot(t_g, wt1_ref[...], preferred_element_type=jnp.float32) + bt1
    r_h = jnp.dot(r_g, wr1_ref[...], preferred_element_type=jnp.float32) + br1

    # Second MLP layers, written into one lane-dense output slab:
    # columns [0:H] carry the trend output, [H:2H] the residual output.
    b2 = bias_ref[3:4, 0:OUT_W]
    out = (jnp.dot(t_h, wt2_ref[...], preferred_element_type=jnp.float32)
           + jnp.dot(r_h, wr2_ref[...], preferred_element_type=jnp.float32)
           + b2)
    out_ref[...] = out.astype(out_ref.dtype)


def gated_mlp_pallas(x, params, seq_len, hidden_units, kernel_size=25, batch_tile=128):
    """Returns (trend_mlp, residual_mlp) each shaped (B, 1, hidden_units)."""
    B, S, F = x.shape
    assert S == seq_len
    H = hidden_units

    OUT_W = _round_up(2 * H, 128)                 # lane-dense packed output width
    PW = _round_up(max(S, H, OUT_W), 128)         # packed-bias slab width

    # Batch tile: 128-row MXU-friendly tiles for large B, else B rounded to 8.
    Bt = batch_tile if B >= batch_tile else _round_up(B, 8)
    B_pad = _round_up(B, Bt)

    # --- constant matrices / packed parameters (built once, outside the kernel) ---
    A_T = jnp.asarray(_moving_avg_matrix(S, kernel_size)).T                  # (S, S)
    w_proj = jnp.kron(jnp.eye(S, dtype=jnp.float32),
                      params["w_in"].astype(jnp.float32))                    # (S*F, S)

    w_t2_pad = jnp.zeros((H, OUT_W), jnp.float32).at[:, :H].set(params["w_t2"])
    w_r2_pad = jnp.zeros((H, OUT_W), jnp.float32).at[:, H:2 * H].set(params["w_r2"])

    bias = jnp.zeros((8, PW), jnp.float32)
    bias = bias.at[0, :S].set(params["b_gate"].reshape(-1))
    bias = bias.at[1, :H].set(params["b_t1"].reshape(-1))
    bias = bias.at[2, :H].set(params["b_r1"].reshape(-1))
    bias = bias.at[3, :H].set(params["b_t2"].reshape(-1))
    bias = bias.at[3, H:2 * H].set(params["b_r2"].reshape(-1))
    bias = bias.at[4, 0].set(params["b_in"].reshape(-1)[0])

    # Input, flattened to (B, S*F) and zero-padded to a whole number of tiles.
    x2d = x.reshape(B, S * F).astype(jnp.float32)
    if B_pad != B:
        x2d = jnp.pad(x2d, ((0, B_pad - B), (0, 0)))

    invariant = lambda shape: pl.BlockSpec(shape, lambda b: (0,) * len(shape))
    in_specs = [
        pl.BlockSpec((Bt, S * F), lambda b: (b, 0)),   # x tile (varies with grid)
        invariant((S * F, S)),                         # w_proj
        invariant((S, S)),                             # A^T
        invariant((S, S)),                             # w_gate
        invariant((S, H)),                             # w_t1
        invariant((S, H)),                             # w_r1
        invariant((H, OUT_W)),                         # w_t2 (padded)
        invariant((H, OUT_W)),                         # w_r2 (padded)
        invariant((8, PW)),                            # packed biases
    ]
    out_specs = pl.BlockSpec((Bt, OUT_W), lambda b: (b, 0))

    fn = pl.pallas_call(
        _gated_mlp_kernel,
        out_shape=jax.ShapeDtypeStruct((B_pad, OUT_W), jnp.float32),
        grid_spec=pltpu.PrefetchScalarGridSpec(
            num_scalar_prefetch=0,
            grid=(B_pad // Bt,),
            in_specs=in_specs,
            out_specs=out_specs,
        ),
        compiler_params=pltpu.CompilerParams(
            dimension_semantics=("parallel",),
        ),
    )
    out = fn(x2d, w_proj, A_T,
             params["w_gate"], params["w_t1"], params["w_r1"],
             w_t2_pad, w_r2_pad, bias)

    trend = out[:B, :H].reshape(B, 1, H)
    resid = out[:B, H:2 * H].reshape(B, 1, H)
    return trend, resid


def _init_params(key, seq_len, num_features, hidden_units):
    """Deterministic synthetic parameters (PyTorch-Linear-style uniform init).

    Weights are stored pre-transposed as (in_features, out_features) so the
    kernel computes y = x @ W + b (== PyTorch's x @ W_pt.T + b).
    """
    ks = jax.random.split(key, 12)
    S, F, H = seq_len, num_features, hidden_units

    def lin(kw, kb, fan_in, shape_w, shape_b):
        bound = 1.0 / np.sqrt(fan_in)
        w = jax.random.uniform(kw, shape_w, jnp.float32, -bound, bound)
        b = jax.random.uniform(kb, shape_b, jnp.float32, -bound, bound)
        return w, b

    w_in, b_in = lin(ks[0], ks[1], F, (F, 1), (1, 1))
    w_g, b_g = lin(ks[2], ks[3], S, (S, S), (1, S))
    w_t1, b_t1 = lin(ks[4], ks[5], S, (S, H), (1, H))
    w_t2, b_t2 = lin(ks[6], ks[7], H, (H, H), (1, H))
    w_r1, b_r1 = lin(ks[8], ks[9], S, (S, H), (1, H))
    w_r2, b_r2 = lin(ks[10], ks[11], H, (H, H), (1, H))
    return dict(
        w_in=w_in, b_in=b_in,
        w_gate=w_g, b_gate=b_g,
        w_t1=w_t1, b_t1=b_t1, w_t2=w_t2, b_t2=b_t2,
        w_r1=w_r1, b_r1=b_r1, w_r2=w_r2, b_r2=b_r2,
    )


def _reference(x, params, kernel_size=25):
    """Pure-JAX reference mirroring the PyTorch forward (for a sanity check)."""
    B, S, F = x.shape
    A = jnp.asarray(_moving_avg_matrix(S, kernel_size))
    trend = jnp.einsum("ts,bsf->btf", A, x)
    resid = x - trend
    t1 = trend @ params["w_in"] + params["b_in"][0, 0]      # (B, S, 1)
    r1 = resid @ params["w_in"] + params["b_in"][0, 0]
    t_vec = jnp.transpose(t1, (0, 2, 1))                    # (B, 1, S)
    r_vec = jnp.transpose(r1, (0, 2, 1))
    gate_t = jax.nn.sigmoid(t_vec @ params["w_gate"] + params["b_gate"])
    gate_r = jax.nn.sigmoid(r_vec @ params["w_gate"] + params["b_gate"])
    t_g = t_vec * gate_t
    r_g = r_vec * gate_r
    t_o = (t_g @ params["w_t1"] + params["b_t1"]) @ params["w_t2"] + params["b_t2"]
    r_o = (r_g @ params["w_r1"] + params["b_r1"]) @ params["w_r2"] + params["b_r2"]
    return t_o, r_o


if __name__ == "__main__":
    # Small shapes consistent with the module: x is (batch, seq_len, num_features).
    B, SEQ_LEN, NUM_FEATURES, HIDDEN = 2, 8, 4, 32
    PRED_LEN = 16  # unused by forward(), kept for parity with __init__

    key = jax.random.PRNGKey(0)
    kx, kp = jax.random.split(key)
    x = jax.random.normal(kx, (B, SEQ_LEN, NUM_FEATURES), dtype=jnp.float32)
    params = _init_params(kp, SEQ_LEN, NUM_FEATURES, HIDDEN)

    trend_out, res_out = gated_mlp_pallas(x, params, SEQ_LEN, HIDDEN)
    jax.block_until_ready((trend_out, res_out))

    t_ref, r_ref = _reference(x, params)
    assert trend_out.shape == (B, 1, HIDDEN) and res_out.shape == (B, 1, HIDDEN)
    np.testing.assert_allclose(np.asarray(trend_out), np.asarray(t_ref), rtol=1e-4, atol=1e-5)
    np.testing.assert_allclose(np.asarray(res_out), np.asarray(r_ref), rtol=1e-4, atol=1e-5)

    print("KERNEL_OK")
</pallas_src>

<mosaic_0001>
module attributes {stable_mosaic.version = 11 : i64} {
  func.func @_gated_mlp_kernel(%arg0: i32, %arg1: memref<8x32xf32, #tpu.memory_space<vmem>>, %arg2: memref<32x8xf32, #tpu.memory_space<vmem>>, %arg3: memref<8x8xf32, #tpu.memory_space<vmem>>, %arg4: memref<8x8xf32, #tpu.memory_space<vmem>>, %arg5: memref<8x32xf32, #tpu.memory_space<vmem>>, %arg6: memref<8x32xf32, #tpu.memory_space<vmem>>, %arg7: memref<32x128xf32, #tpu.memory_space<vmem>>, %arg8: memref<32x128xf32, #tpu.memory_space<vmem>>, %arg9: memref<8x128xf32, #tpu.memory_space<vmem>>, %arg10: memref<8x128xf32, #tpu.memory_space<vmem>>) attributes {dimension_semantics = [#tpu.dimension_semantics<parallel>], iteration_bounds = array<i64: 1>, scalar_prefetch = 0 : i64, scratch_operands = 0 : i64, tpu.core_type = #tpu.core_type<tc>, window_params = [{transform_indices = @transform_0, window_bounds = array<i64: 8, 32>}, {pipeline_mode = #tpu.pipeline_mode<synchronous>, transform_indices = @transform_1, window_bounds = array<i64: 32, 8>}, {pipeline_mode = #tpu.pipeline_mode<synchronous>, transform_indices = @transform_2, window_bounds = array<i64: 8, 8>}, {pipeline_mode = #tpu.pipeline_mode<synchronous>, transform_indices = @transform_3, window_bounds = array<i64: 8, 8>}, {pipeline_mode = #tpu.pipeline_mode<synchronous>, transform_indices = @transform_4, window_bounds = array<i64: 8, 32>}, {pipeline_mode = #tpu.pipeline_mode<synchronous>, transform_indices = @transform_5, window_bounds = array<i64: 8, 32>}, {pipeline_mode = #tpu.pipeline_mode<synchronous>, transform_indices = @transform_6, window_bounds = array<i64: 32, 128>}, {pipeline_mode = #tpu.pipeline_mode<synchronous>, transform_indices = @transform_7, window_bounds = array<i64: 32, 128>}, {pipeline_mode = #tpu.pipeline_mode<synchronous>, transform_indices = @transform_8, window_bounds = array<i64: 8, 128>}, {transform_indices = @transform_9, window_bounds = array<i64: 8, 128>}]} {
    %c0 = arith.constant 0 : index
    %c0_0 = arith.constant 0 : index
    %0 = vector.load %arg1[%c0, %c0_0] : memref<8x32xf32, #tpu.memory_space<vmem>>, vector<8x32xf32>
    %c0_1 = arith.constant 0 : index
    %c0_2 = arith.constant 0 : index
    %1 = vector.load %arg2[%c0_1, %c0_2] : memref<32x8xf32, #tpu.memory_space<vmem>>, vector<32x8xf32>
    %cst = arith.constant dense<0.000000e+00> : vector<8x8xf32>
    %2 = tpu.matmul %0, %1, %cst {dimension_numbers = #tpu.dot_dimension_numbers<[1], [0], [0], [1], [0, 0, 1, 1], [], []>} : vector<8x32xf32>, vector<32x8xf32>, vector<8x8xf32> -> vector<8x8xf32>
    %c0_3 = arith.constant 0 : index
    %c0_4 = arith.constant 0 : index
    %3 = vector.load %arg3[%c0_3, %c0_4] : memref<8x8xf32, #tpu.memory_space<vmem>>, vector<8x8xf32>
    %cst_5 = arith.constant dense<0.000000e+00> : vector<8x8xf32>
    %4 = tpu.matmul %2, %3, %cst_5 {dimension_numbers = #tpu.dot_dimension_numbers<[1], [0], [0], [1], [0, 0, 1, 1], [], []>} : vector<8x8xf32>, vector<8x8xf32>, vector<8x8xf32> -> vector<8x8xf32>
    %5 = arith.subf %2, %4 : vector<8x8xf32>
    %c4 = arith.constant 4 : index
    %c0_6 = arith.constant 0 : index
    %6 = vector.load %arg9[%c4, %c0_6] : memref<8x128xf32, #tpu.memory_space<vmem>>, vector<1x1xf32>
    %7 = vector.broadcast %6 : vector<1x1xf32> to vector<8x8xf32>
    %8 = arith.addf %4, %7 : vector<8x8xf32>
    %9 = vector.broadcast %6 : vector<1x1xf32> to vector<8x8xf32>
    %10 = arith.addf %5, %9 : vector<8x8xf32>
    %c0_7 = arith.constant 0 : index
    %c0_8 = arith.constant 0 : index
    %11 = vector.load %arg4[%c0_7, %c0_8] : memref<8x8xf32, #tpu.memory_space<vmem>>, vector<8x8xf32>
    %c0_9 = arith.constant 0 : index
    %c0_10 = arith.constant 0 : index
    %12 = vector.load %arg9[%c0_9, %c0_10] : memref<8x128xf32, #tpu.memory_space<vmem>>, vector<1x8xf32>
    %cst_11 = arith.constant dense<0.000000e+00> : vector<8x8xf32>
    %13 = tpu.matmul %8, %11, %cst_11 {dimension_numbers = #tpu.dot_dimension_numbers<[1], [0], [0], [1], [0, 0, 1, 1], [], []>} : vector<8x8xf32>, vector<8x8xf32>, vector<8x8xf32> -> vector<8x8xf32>
    %14 = vector.broadcast %12 : vector<1x8xf32> to vector<8x8xf32>
    %15 = arith.addf %13, %14 : vector<8x8xf32>
    %16 = arith.negf %15 : vector<8x8xf32>
    %17 = math.exp %16 : vector<8x8xf32>
    %cst_12 = arith.constant 1.000000e+00 : f32
    %18 = vector.broadcast %cst_12 : f32 to vector<8x8xf32>
    %19 = arith.addf %18, %17 : vector<8x8xf32>
    %20 = arith.divf %18, %19 : vector<8x8xf32>
    %cst_13 = arith.constant dense<0.000000e+00> : vector<8x8xf32>
    %21 = tpu.matmul %10, %11, %cst_13 {dimension_numbers = #tpu.dot_dimension_numbers<[1], [0], [0], [1], [0, 0, 1, 1], [], []>} : vector<8x8xf32>, vector<8x8xf32>, vector<8x8xf32> -> vector<8x8xf32>
    %22 = vector.broadcast %12 : vector<1x8xf32> to vector<8x8xf32>
    %23 = arith.addf %21, %22 : vector<8x8xf32>
    %24 = arith.negf %23 : vector<8x8xf32>
    %25 = math.exp %24 : vector<8x8xf32>
    %cst_14 = arith.constant 1.000000e+00 : f32
    %26 = vector.broadcast %cst_14 : f32 to vector<8x8xf32>
    %27 = arith.addf %26, %25 : vector<8x8xf32>
    %28 = arith.divf %26, %27 : vector<8x8xf32>
    %29 = arith.mulf %8, %20 : vector<8x8xf32>
    %30 = arith.mulf %10, %28 : vector<8x8xf32>
    %c1 = arith.constant 1 : index
    %c0_15 = arith.constant 0 : index
    %31 = vector.load %arg9[%c1, %c0_15] : memref<8x128xf32, #tpu.memory_space<vmem>>, vector<1x32xf32>
    %c2 = arith.constant 2 : index
    %c0_16 = arith.constant 0 : index
    %32 = vector.load %arg9[%c2, %c0_16] : memref<8x128xf32, #tpu.memory_space<vmem>>, vector<1x32xf32>
    %c0_17 = arith.constant 0 : index
    %c0_18 = arith.constant 0 : index
    %33 = vector.load %arg5[%c0_17, %c0_18] : memref<8x32xf32, #tpu.memory_space<vmem>>, vector<8x32xf32>
    %cst_19 = arith.constant dense<0.000000e+00> : vector<8x32xf32>
    %34 = tpu.matmul %29, %33, %cst_19 {dimension_numbers = #tpu.dot_dimension_numbers<[1], [0], [0], [1], [0, 0, 1, 1], [], []>} : vector<8x8xf32>, vector<8x32xf32>, vector<8x32xf32> -> vector<8x32xf32>
    %35 = vector.broadcast %31 : vector<1x32xf32> to vector<8x32xf32>
    %36 = arith.addf %34, %35 : vector<8x32xf32>
    %c0_20 = arith.constant 0 : index
    %c0_21 = arith.constant 0 : index
    %37 = vector.load %arg6[%c0_20, %c0_21] : memref<8x32xf32, #tpu.memory_space<vmem>>, vector<8x32xf32>
    %cst_22 = arith.constant dense<0.000000e+00> : vector<8x32xf32>
    %38 = tpu.matmul %30, %37, %cst_22 {dimension_numbers = #tpu.dot_dimension_numbers<[1], [0], [0], [1], [0, 0, 1, 1], [], []>} : vector<8x8xf32>, vector<8x32xf32>, vector<8x32xf32> -> vector<8x32xf32>
    %39 = vector.broadcast %32 : vector<1x32xf32> to vector<8x32xf32>
    %40 = arith.addf %38, %39 : vector<8x32xf32>
    %c3 = arith.constant 3 : index
    %c0_23 = arith.constant 0 : index
    %41 = vector.load %arg9[%c3, %c0_23] : memref<8x128xf32, #tpu.memory_space<vmem>>, vector<1x128xf32>
    %c0_24 = arith.constant 0 : index
    %c0_25 = arith.constant 0 : index
    %42 = vector.load %arg7[%c0_24, %c0_25] : memref<32x128xf32, #tpu.memory_space<vmem>>, vector<32x128xf32>
    %cst_26 = arith.constant dense<0.000000e+00> : vector<8x128xf32>
    %43 = tpu.matmul %36, %42, %cst_26 {dimension_numbers = #tpu.dot_dimension_numbers<[1], [0], [0], [1], [0, 0, 1, 1], [], []>} : vector<8x32xf32>, vector<32x128xf32>, vector<8x128xf32> -> vector<8x128xf32>
    %c0_27 = arith.constant 0 : index
    %c0_28 = arith.constant 0 : index
    %44 = vector.load %arg8[%c0_27, %c0_28] : memref<32x128xf32, #tpu.memory_space<vmem>>, vector<32x128xf32>
    %cst_29 = arith.constant dense<0.000000e+00> : vector<8x128xf32>
    %45 = tpu.matmul %40, %44, %cst_29 {dimension_numbers = #tpu.dot_dimension_numbers<[1], [0], [0], [1], [0, 0, 1, 1], [], []>} : vector<8x32xf32>, vector<32x128xf32>, vector<8x128xf32> -> vector<8x128xf32>
    %46 = arith.addf %43, %45 : vector<8x128xf32>
    %47 = vector.broadcast %41 : vector<1x128xf32> to vector<8x128xf32>
    %48 = arith.addf %46, %47 : vector<8x128xf32>
    %c0_30 = arith.constant 0 : index
    %c0_31 = arith.constant 0 : index
    %49 = vector.load %arg10[%c0_30, %c0_31] : memref<8x128xf32, #tpu.memory_space<vmem>>, vector<8x128xf32>
    tpu.vector_store %arg10[%c0_30, %c0_31], %48 {strides = array<i32>} : memref<8x128xf32, #tpu.memory_space<vmem>>, vector<8x128xf32>,
    return
  }
  func.func @transform_0(%arg0: i32) -> (i32, i32) {
    %c0_i32 = arith.constant 0 : i32
    %c0_i32_0 = arith.constant 0 : i32
    return %arg0, %c0_i32 : i32, i32
  }
  func.func @transform_1(%arg0: i32) -> (i32, i32) {
    %c0_i32 = arith.constant 0 : i32
    %c0_i32_0 = arith.constant 0 : i32
    %c0_i32_1 = arith.constant 0 : i32
    return %c0_i32, %c0_i32_0 : i32, i32
  }
  func.func @transform_2(%arg0: i32) -> (i32, i32) {
    %c0_i32 = arith.constant 0 : i32
    %c0_i32_0 = arith.constant 0 : i32
    %c0_i32_1 = arith.constant 0 : i32
    return %c0_i32, %c0_i32_0 : i32, i32
  }
  func.func @transform_3(%arg0: i32) -> (i32, i32) {
    %c0_i32 = arith.constant 0 : i32
    %c0_i32_0 = arith.constant 0 : i32
    %c0_i32_1 = arith.constant 0 : i32
    return %c0_i32, %c0_i32_0 : i32, i32
  }
  func.func @transform_4(%arg0: i32) -> (i32, i32) {
    %c0_i32 = arith.constant 0 : i32
    %c0_i32_0 = arith.constant 0 : i32
    %c0_i32_1 = arith.constant 0 : i32
    return %c0_i32, %c0_i32_0 : i32, i32
  }
  func.func @transform_5(%arg0: i32) -> (i32, i32) {
    %c0_i32 = arith.constant 0 : i32
    %c0_i32_0 = arith.constant 0 : i32
    %c0_i32_1 = arith.constant 0 : i32
    return %c0_i32, %c0_i32_0 : i32, i32
  }
  func.func @transform_6(%arg0: i32) -> (i32, i32) {
    %c0_i32 = arith.constant 0 : i32
    %c0_i32_0 = arith.constant 0 : i32
    %c0_i32_1 = arith.constant 0 : i32
    return %c0_i32, %c0_i32_0 : i32, i32
  }
  func.func @transform_7(%arg0: i32) -> (i32, i32) {
    %c0_i32 = arith.constant 0 : i32
    %c0_i32_0 = arith.constant 0 : i32
    %c0_i32_1 = arith.constant 0 : i32
    return %c0_i32, %c0_i32_0 : i32, i32
  }
  func.func @transform_8(%arg0: i32) -> (i32, i32) {
    %c0_i32 = arith.constant 0 : i32
    %c0_i32_0 = arith.constant 0 : i32
    %c0_i32_1 = arith.constant 0 : i32
    return %c0_i32, %c0_i32_0 : i32, i32
  }
  func.func @transform_9(%arg0: i32) -> (i32, i32) {
    %c0_i32 = arith.constant 0 : i32
    %c0_i32_0 = arith.constant 0 : i32
    return %arg0, %c0_i32 : i32, i32
  }
}

</mosaic_0001>

<llo_original>
// kernel: tpu_custom_call.1
$region0: #{tpu_custom_call.1}
  #allocation0 [shape = 'u32[]', space=smem, size = 0x4, offset = 0x4, fixed_abs, tag = 'smem constant byte address 0x4 - core index']
  #allocation1 [shape = 'u32[72,128]{1,0:T(1,128)}', space=vmem, size = 0x9000, scoped, tag = 'internal scratch']
  %s0 = inlined_call_operand.vmem [shape: f32[8,32], index: 0, kind: input, shape index: {}]
  %s1 = inlined_call_operand.vmem [shape: f32[32,8], index: 1, kind: input, shape index: {}]
  %s2 = inlined_call_operand.hbm [shape: f32[8,8], index: 2, kind: input, shape index: {}]
  %s3 = inlined_call_operand.hbm [shape: f32[8,8], index: 3, kind: input, shape index: {}]
  %s4 = inlined_call_operand.hbm [shape: f32[8,32], index: 4, kind: input, shape index: {}]
  %s5 = inlined_call_operand.hbm [shape: f32[8,32], index: 5, kind: input, shape index: {}]
  %s6 = inlined_call_operand.vmem [shape: f32[32,128], index: 6, kind: input, shape index: {}]
  %s7 = inlined_call_operand.hbm [shape: f32[32,128], index: 7, kind: input, shape index: {}]
  %s8 = inlined_call_operand.hbm [shape: f32[8,128], index: 8, kind: input, shape index: {}]
  %s9 = inlined_call_operand.hbm [shape: f32[8,128], index: 9, kind: output, shape index: {}]
  %s10 = sld [smem:[#allocation0]]
  $region70: #{tpu_custom_call.1} parent=0
    _
  %s12 = ssub.s32 1, %s10
  %s13 = scalar_select 0, %s12, %s10
  $region1: #{tpu_custom_call.1} parent=0
    #allocation2 [shape = 'u8[4096]{0}', space=vmem, size = 0x1000, scoped, tag = 'input window, operand 2, single buffered']
    #allocation3 [shape = 's32[1]{0}', space=sflag, size = 0x4, scoped, tag = 'scoped memory for tpu_custom_call.1']
    #allocation4 [shape = 's32[1]{0}', space=sflag, size = 0x4, scoped, tag = 'scoped memory for tpu_custom_call.1']
    #allocation5 [shape = 'u8[4096]{0}', space=vmem, size = 0x1000, scoped, tag = 'input window, operand 3, single buffered']
    #allocation6 [shape = 's32[1]{0}', space=sflag, size = 0x4, scoped, tag = 'scoped memory for tpu_custom_call.1']
    #allocation7 [shape = 'u8[4096]{0}', space=vmem, size = 0x1000, scoped, tag = 'input window, operand 4, single buffered']
    #allocation8 [shape = 'u8[4096]{0}', space=vmem, size = 0x1000, scoped, tag = 'input window, operand 5, single buffered']
    #allocation9 [shape = 's32[1]{0}', space=sflag, size = 0x4, scoped, tag = 'scoped memory for tpu_custom_call.1']
    #allocation10 [shape = 'u8[16384]{0}', space=vmem, size = 0x4000, scoped, tag = 'input window, operand 7, single buffered']
    #allocation11 [shape = 'u8[4096]{0}', space=vmem, size = 0x1000, scoped, tag = 'input window, operand 8, single buffered']
    #allocation12 [shape = 's32[1]{0}', space=sflag, size = 0x4, scoped, tag = 'scoped memory for tpu_custom_call.1']
    #allocation13 [shape = 'u8[4096]{0}', space=vmem, size = 0x1000, scoped, tag = 'output window, operand 0, single buffered']
    %14 = vsyncpa [#allocation3], 0
    %15 = vsyncpa [#allocation6], 0
    %16 = vsyncpa [#allocation9], 0
    %17 = vsyncpa [#allocation12], 0
    %18 = vsyncpa [#allocation4], 0
    // Predicated region
    $region2: #{tpu_custom_call.1} parent=1 // pred_check
      _
    $region3: #{tpu_custom_call.1} parent=1 // pred_check_branch
      %20 = sbr.rel (0) target = $region5
    $region4: #{tpu_custom_call.1} parent=1 // pred_region
      _
    $region5: #{tpu_custom_call.1} parent=1 // pred_fallthru
      _
    // Predicated region
    $region6: #{tpu_custom_call.1} parent=1 // pred_check
      _
    $region7: #{tpu_custom_call.1} parent=1 // pred_check_branch
      %22 = sbr.rel (0) target = $region9
    $region8: #{tpu_custom_call.1} parent=1 // pred_region
      _
    $region9: #{tpu_custom_call.1} parent=1 // pred_fallthru
      _
    // Predicated region
    $region10: #{tpu_custom_call.1} parent=1 // pred_check
      _
    $region11: #{tpu_custom_call.1} parent=1 // pred_check_branch
      %24 = sbr.rel (0) target = $region13
    $region12: #{tpu_custom_call.1} parent=1 // pred_region
      %26 = vsyncadd [#allocation3], 0
      %s28 = sshll.u32 %s2, 4
      %s29 = int_to_ptr.hbm [resolvable:$true] %s28
      %s30 = sshll.u32 [#allocation2], 4
      %s31 = int_to_ptr.vmem [resolvable:$true] %s30
      %33 = dma.hbm_to_vmem [thread:$0]  %s29, 128, %s31, [#allocation3]
    $region13: #{tpu_custom_call.1} parent=1 // pred_fallthru
      _
    // Predicated region
    $region14: #{tpu_custom_call.1} parent=1 // pred_check
      _
    $region15: #{tpu_custom_call.1} parent=1 // pred_check_branch
      %35 = sbr.rel (0) target = $region17
    $region16: #{tpu_custom_call.1} parent=1 // pred_region
      %37 = vsyncadd [#allocation6], 0
      %s39 = sshll.u32 %s3, 4
      %s40 = int_to_ptr.hbm [resolvable:$true] %s39
      %s41 = sshll.u32 [#allocation5], 4
      %s42 = int_to_ptr.vmem [resolvable:$true] %s41
      %44 = dma.hbm_to_vmem [thread:$0]  %s40, 128, %s42, [#allocation6]
    $region17: #{tpu_custom_call.1} parent=1 // pred_fallthru
      _
    // Predicated region
    $region18: #{tpu_custom_call.1} parent=1 // pred_check
      _
    $region19: #{tpu_custom_call.1} parent=1 // pred_check_branch
      %46 = sbr.rel (0) target = $region21
    $region20: #{tpu_custom_call.1} parent=1 // pred_region
      %48 = vsyncadd [#allocation6], 0
      %s50 = sshll.u32 %s4, 4
      %s51 = int_to_ptr.hbm [resolvable:$true] %s50
      %s52 = sshll.u32 [#allocation7], 4
      %s53 = int_to_ptr.vmem [resolvable:$true] %s52
      %55 = dma.hbm_to_vmem [thread:$0]  %s51, 128, %s53, [#allocation6]
    $region21: #{tpu_custom_call.1} parent=1 // pred_fallthru
      _
    // Predicated region
    $region22: #{tpu_custom_call.1} parent=1 // pred_check
      _
    $region23: #{tpu_custom_call.1} parent=1 // pred_check_branch
      %57 = sbr.rel (0) target = $region25
    $region24: #{tpu_custom_call.1} parent=1 // pred_region
      %59 = vsyncadd [#allocation9], 0
      %s61 = sshll.u32 %s5, 4
      %s62 = int_to_ptr.hbm [resolvable:$true] %s61
      %s63 = sshll.u32 [#allocation8], 4
      %s64 = int_to_ptr.vmem [resolvable:$true] %s63
      %66 = dma.hbm_to_vmem [thread:$0]  %s62, 128, %s64, [#allocation9]
    $region25: #{tpu_custom_call.1} parent=1 // pred_fallthru
      _
    // Predicated region
    $region26: #{tpu_custom_call.1} parent=1 // pred_check
      _
    $region27: #{tpu_custom_call.1} parent=1 // pred_check_branch
      %68 = sbr.rel (0) target = $region29
    $region28: #{tpu_custom_call.1} parent=1 // pred_region
      _
    $region29: #{tpu_custom_call.1} parent=1 // pred_fallthru
      _
    // Predicated region
    $region30: #{tpu_custom_call.1} parent=1 // pred_check
      _
    $region31: #{tpu_custom_call.1} parent=1 // pred_check_branch
      %70 = sbr.rel (0) target = $region33
    $region32: #{tpu_custom_call.1} parent=1 // pred_region
      %72 = vsyncadd [#allocation9], 0
      %s73 = sshll.u32 %s7, 4
      %s74 = int_to_ptr.hbm [resolvable:$true] %s73
      %s75 = sshll.u32 [#allocation10], 4
      %s76 = int_to_ptr.vmem [resolvable:$true] %s75
      %81 = dma.hbm_to_vmem [thread:$0]  %s74, 512, %s76, [#allocation9], 128, 128, 8
    $region33: #{tpu_custom_call.1} parent=1 // pred_fallthru
      _
    // Predicated region
    $region34: #{tpu_custom_call.1} parent=1 // pred_check
      _
    $region35: #{tpu_custom_call.1} parent=1 // pred_check_branch
      %83 = sbr.rel (0) target = $region37
    $region36: #{tpu_custom_call.1} parent=1 // pred_region
      %85 = vsyncadd [#allocation12], 0
      %s87 = sshll.u32 %s8, 4
      %s88 = int_to_ptr.hbm [resolvable:$true] %s87
      %s89 = sshll.u32 [#allocation11], 4
      %s90 = int_to_ptr.vmem [resolvable:$true] %s89
      %92 = dma.hbm_to_vmem [thread:$0]  %s88, 128, %s90, [#allocation12]
    $region37: #{tpu_custom_call.1} parent=1 // pred_fallthru
      _
    // Predicated region
    $region38: #{tpu_custom_call.1} parent=1 // pred_check
      _
    $region39: #{tpu_custom_call.1} parent=1 // pred_check_branch
      %94 = sbr.rel (0) target = $region41
    $region40: #{tpu_custom_call.1} parent=1 // pred_region
      %96 = dma.done [#allocation3], 128
    $region41: #{tpu_custom_call.1} parent=1 // pred_fallthru
      _
    // Predicated region
    $region42: #{tpu_custom_call.1} parent=1 // pred_check
      _
    $region43: #{tpu_custom_call.1} parent=1 // pred_check_branch
      %98 = sbr.rel (0) target = $region45
    $region44: #{tpu_custom_call.1} parent=1 // pred_region
      %100 = dma.done [#allocation6], 128
    $region45: #{tpu_custom_call.1} parent=1 // pred_fallthru
      _
    // Predicated region
    $region46: #{tpu_custom_call.1} parent=1 // pred_check
      _
    $region47: #{tpu_custom_call.1} parent=1 // pred_check_branch
      %102 = sbr.rel (0) target = $region49
    $region48: #{tpu_custom_call.1} parent=1 // pred_region
      %104 = dma.done [#allocation6], 128
    $region49: #{tpu_custom_call.1} parent=1 // pred_fallthru
      _
    // Predicated region
    $region50: #{tpu_custom_call.1} parent=1 // pred_check
      _
    $region51: #{tpu_custom_call.1} parent=1 // pred_check_branch
      %106 = sbr.rel (0) target = $region53
    $region52: #{tpu_custom_call.1} parent=1 // pred_region
      %108 = dma.done [#allocation9], 128
    $region53: #{tpu_custom_call.1} parent=1 // pred_fallthru
      _
    // Predicated region
    $region54: #{tpu_custom_call.1} parent=1 // pred_check
      _
    $region55: #{tpu_custom_call.1} parent=1 // pred_check_branch
      %110 = sbr.rel (0) target = $region57
    $region56: #{tpu_custom_call.1} parent=1 // pred_region
      %112 = dma.done [#allocation9], 512
    $region57: #{tpu_custom_call.1} parent=1 // pred_fallthru
      _
    // Predicated region
    $region58: #{tpu_custom_call.1} parent=1 // pred_check
      _
    $region59: #{tpu_custom_call.1} parent=1 // pred_check_branch
      %114 = sbr.rel (0) target = $region61
    $region60: #{tpu_custom_call.1} parent=1 // pred_region
      %116 = dma.done [#allocation12], 128
    $region61: #{tpu_custom_call.1} parent=1 // pred_fallthru
      _
    %v117 = vld [vmem:[%s0] sm:$0xff]
    %v118 = vld [vmem:[%s1] sm:$0xff]
    %v119 = vld [vmem:[%s1 + $0x8] sm:$0xff]
    %v120 = vld [vmem:[%s1 + $0x10] sm:$0xff]
    %v121 = vld [vmem:[%s1 + $0x18] sm:$0xff]
    %vm122 = vcmask 261120
    %v124 = vsel %vm122, %v117, 0
    %126 = vmatpush.msra.mxu0 0.0
    %127 = vmatpush.msra.mxu0 0.0
    %128 = vmatpush.msra.mxu0 0.0
    %129 = vmatpush.msra.mxu0 0.0
    %130 = vmatpush.msra.mxu0 0.0
    %131 = vmatpush.msra.mxu0 0.0
    %132 = vmatpush.msra.mxu0 0.0
    %133 = vmatpush.msra.mxu0 0.0
    %134 = vmatpush.msra.mxu0 0.0
    %135 = vmatpush.msra.mxu0 0.0
    %136 = vmatpush.msra.mxu0 0.0
    %137 = vmatpush.msra.mxu0 0.0
    %138 = vmatpush.msra.mxu0 %v121
    %139 = vmatpush.msra.mxu0 %v120
    %140 = vmatpush.msra.mxu0 %v119
    %141 = vmatpush.msra.mxu0 %v118
    %142 = vmatmul.f32.gmra.mxu0 %v124
    %v143 = vpop.f32.mrf.mxu0
    %v144 = vadd.f32 0.0, %v143
    %145 = vdwg.mxu0
    %v146 = vld [vmem:[#allocation2] sm:$0xff]
    %vm147 = vcmask 64512
    %v149 = vsel %vm147, %v144, 0
    %151 = vmatpush.msra.mxu0 0.0
    %152 = vmatpush.msra.mxu0 0.0
    %153 = vmatpush.msra.mxu0 0.0
    %154 = vmatpush.msra.mxu0 0.0
    %155 = vmatpush.msra.mxu0 0.0
    %156 = vmatpush.msra.mxu0 0.0
    %157 = vmatpush.msra.mxu0 0.0
    %158 = vmatpush.msra.mxu0 0.0
    %159 = vmatpush.msra.mxu0 0.0
    %160 = vmatpush.msra.mxu0 0.0
    %161 = vmatpush.msra.mxu0 0.0
    %162 = vmatpush.msra.mxu0 0.0
    %163 = vmatpush.msra.mxu0 0.0
    %164 = vmatpush.msra.mxu0 0.0
    %165 = vmatpush.msra.mxu0 0.0
    %166 = vmatpush.msra.mxu0 %v146
    %167 = vmatmul.f32.gmra.mxu0 %v149
    %v168 = vpop.f32.mrf.mxu0
    %v169 = vadd.f32 0.0, %v168
    %170 = vdwg.mxu0
    %v171 = vsub.f32 %v144, %v169
    %v172 = vld [vmem:[#allocation11 + $0x4] sm:$0x1]
    %s174 = vtos %v172
    %v175 = vstv %s174
    %v177 = vadd.f32 %v169, %v175
    %v178 = vadd.f32 %v171, %v175
    %v179 = vld [vmem:[#allocation5] sm:$0xff]
    %v180 = vld [vmem:[#allocation11] sm:$0x1]
    %v181 = vperm.slane %v180, 0
    %v183 = vsel %vm147, %v177, 0
    %185 = vmatpush.msra.mxu0 0.0
    %186 = vmatpush.msra.mxu0 0.0
    %187 = vmatpush.msra.mxu0 0.0
    %188 = vmatpush.msra.mxu0 0.0
    %189 = vmatpush.msra.mxu0 0.0
    %190 = vmatpush.msra.mxu0 0.0
    %191 = vmatpush.msra.mxu0 0.0
    %192 = vmatpush.msra.mxu0 0.0
    %193 = vmatpush.msra.mxu0 0.0
    %194 = vmatpush.msra.mxu0 0.0
    %195 = vmatpush.msra.mxu0 0.0
    %196 = vmatpush.msra.mxu0 0.0
    %197 = vmatpush.msra.mxu0 0.0
    %198 = vmatpush.msra.mxu0 0.0
    %199 = vmatpush.msra.mxu0 0.0
    %200 = vmatpush.msra.mxu0 %v179
    %201 = vmatmul.f32.gmra.mxu0 %v183
    %v202 = vpop.f32.mrf.mxu0
    %v203 = vadd.f32 %v181, %v202
    %204 = vdwg.mxu0
    %v205 = vxor.u32 %v203, 2147483648
    %v206 = vmul.f32 %v205, 1.442695
    %v207 = vpow.pop %v206
    %v208 = vadd.f32 %v207, 1.0
    %v209 = vrcp.pop %v208
    %v210 = vmul.f32 %v208, %v209
    %v211 = vsub.f32 1.0, %v210
    %v212 = vmul.f32 %v209, %v211
    %v213 = vadd.f32 %v209, %v212
    %vm214 = vweird.f32 %v208
    %vm215 = vweird.f32 %v209
    %vm216 = vmor %vm214, %vm215
    %v217 = vsel %vm216, %v209, %v213
    %v218 = vand.u32 2147483647, %v208
    %vm219 = vcmp.eq.f32.partialorder %v218, 8.507059e+37
    %v220 = vand.u32 %v208, 2147483648
    %v221 = vor.u32 1.1754944e-38, %v220
    %v222 = vsel %vm219, %v221, %v217
    %v223 = vmul.f32 1.0, %v222
    %v225 = vsel %vm147, %v178, 0
    %227 = vmatpush.msra.mxu0 0.0
    %228 = vmatpush.msra.mxu0 0.0
    %229 = vmatpush.msra.mxu0 0.0
    %230 = vmatpush.msra.mxu0 0.0
    %231 = vmatpush.msra.mxu0 0.0
    %232 = vmatpush.msra.mxu0 0.0
    %233 = vmatpush.msra.mxu0 0.0
    %234 = vmatpush.msra.mxu0 0.0
    %235 = vmatpush.msra.mxu0 0.0
    %236 = vmatpush.msra.mxu0 0.0
    %237 = vmatpush.msra.mxu0 0.0
    %238 = vmatpush.msra.mxu0 0.0
    %239 = vmatpush.msra.mxu0 0.0
    %240 = vmatpush.msra.mxu0 0.0
    %241 = vmatpush.msra.mxu0 0.0
    %242 = vmatpush.msra.mxu0 %v179
    %243 = vmatmul.f32.gmra.mxu0 %v225
    %v244 = vpop.f32.mrf.mxu0
    %v245 = vadd.f32 %v181, %v244
    %246 = vdwg.mxu0
    %v247 = vxor.u32 %v245, 2147483648
    %v248 = vmul.f32 %v247, 1.442695
    %v249 = vpow.pop %v248
    %v250 = vadd.f32 %v249, 1.0
    %v251 = vrcp.pop %v250
    %v252 = vmul.f32 %v250, %v251
    %v253 = vsub.f32 1.0, %v252
    %v254 = vmul.f32 %v251, %v253
    %v255 = vadd.f32 %v251, %v254
    %vm256 = vweird.f32 %v250
    %vm257 = vweird.f32 %v251
    %vm258 = vmor %vm256, %vm257
    %v259 = vsel %vm258, %v251, %v255
    %v260 = vand.u32 2147483647, %v250
    %vm261 = vcmp.eq.f32.partialorder %v260, 8.507059e+37
    %v262 = vand.u32 %v250, 2147483648
    %v263 = vor.u32 1.1754944e-38, %v262
    %v264 = vsel %vm261, %v263, %v259
    %v265 = vmul.f32 1.0, %v264
    %v266 = vmul.f32 %v177, %v223
    %v267 = vmul.f32 %v178, %v265
    %v268 = vld [vmem:[#allocation11 + $0x1] sm:$0x1]
    %v269 = vld [vmem:[#allocation11 + $0x2] sm:$0x1]
    %v270 = vld [vmem:[#allocation7] sm:$0xff]
    %v271 = vperm.slane %v268, 0
    %v273 = vsel %vm147, %v266, 0
    %275 = vmatpush.msra.mxu0 0.0
    %276 = vmatpush.msra.mxu0 0.0
    %277 = vmatpush.msra.mxu0 0.0
    %278 = vmatpush.msra.mxu0 0.0
    %279 = vmatpush.msra.mxu0 0.0
    %280 = vmatpush.msra.mxu0 0.0
    %281 = vmatpush.msra.mxu0 0.0
    %282 = vmatpush.msra.mxu0 0.0
    %283 = vmatpush.msra.mxu0 0.0
    %284 = vmatpush.msra.mxu0 0.0
    %285 = vmatpush.msra.mxu0 0.0
    %286 = vmatpush.msra.mxu0 0.0
    %287 = vmatpush.msra.mxu0 0.0
    %288 = vmatpush.msra.mxu0 0.0
    %289 = vmatpush.msra.mxu0 0.0
    %290 = vmatpush.msra.mxu0 %v270
    %291 = vmatmul.f32.gmra.mxu0 %v273
    %v292 = vpop.f32.mrf.mxu0
    %v293 = vadd.f32 %v271, %v292
    %294 = vdwg.mxu0
    %v295 = vld [vmem:[#allocation8] sm:$0xff]
    %v296 = vperm.slane %v269, 0
    %v298 = vsel %vm147, %v267, 0
    %300 = vmatpush.msra.mxu0 0.0
    %301 = vmatpush.msra.mxu0 0.0
    %302 = vmatpush.msra.mxu0 0.0
    %303 = vmatpush.msra.mxu0 0.0
    %304 = vmatpush.msra.mxu0 0.0
    %305 = vmatpush.msra.mxu0 0.0
    %306 = vmatpush.msra.mxu0 0.0
    %307 = vmatpush.msra.mxu0 0.0
    %308 = vmatpush.msra.mxu0 0.0
    %309 = vmatpush.msra.mxu0 0.0
    %310 = vmatpush.msra.mxu0 0.0
    %311 = vmatpush.msra.mxu0 0.0
    %312 = vmatpush.msra.mxu0 0.0
    %313 = vmatpush.msra.mxu0 0.0
    %314 = vmatpush.msra.mxu0 0.0
    %315 = vmatpush.msra.mxu0 %v295
    %316 = vmatmul.f32.gmra.mxu0 %v298
    %v317 = vpop.f32.mrf.mxu0
    %v318 = vadd.f32 %v296, %v317
    %319 = vdwg.mxu0
    %v320 = vld [vmem:[#allocation11 + $0x3] sm:$0x1]
    %v321 = vld [vmem:[%s6] sm:$0xff]
    %v322 = vld [vmem:[%s6 + $0x8] sm:$0xff]
    %v323 = vld [vmem:[%s6 + $0x10] sm:$0xff]
    %v324 = vld [vmem:[%s6 + $0x18] sm:$0xff]
    %v325 = vld [vmem:[#allocation10] sm:$0xff]
    %v326 = vld [vmem:[#allocation10 + $0x8] sm:$0xff]
    %v327 = vld [vmem:[#allocation10 + $0x10] sm:$0xff]
    %v328 = vld [vmem:[#allocation10 + $0x18] sm:$0xff]
    %v330 = vsel %vm122, %v318, 0
    %332 = vmatpush.msra.mxu0 0.0
    %333 = vmatpush.msra.mxu0 0.0
    %334 = vmatpush.msra.mxu0 0.0
    %335 = vmatpush.msra.mxu0 0.0
    %336 = vmatpush.msra.mxu0 0.0
    %337 = vmatpush.msra.mxu0 0.0
    %338 = vmatpush.msra.mxu0 0.0
    %339 = vmatpush.msra.mxu0 0.0
    %340 = vmatpush.msra.mxu0 0.0
    %341 = vmatpush.msra.mxu0 0.0
    %342 = vmatpush.msra.mxu0 0.0
    %343 = vmatpush.msra.mxu0 0.0
    %344 = vmatpush.msra.mxu0 %v328
    %345 = vmatpush.msra.mxu0 %v327
    %346 = vmatpush.msra.mxu0 %v326
    %347 = vmatpush.msra.mxu0 %v325
    %348 = vmatmul.f32.gmra.mxu0 %v330
    %v349 = vpop.f32.mrf.mxu0
    %v350 = vadd.f32 0.0, %v349
    %351 = vdwg.mxu0
    %v353 = vsel %vm122, %v293, 0
    %355 = vmatpush.msra.mxu0 0.0
    %356 = vmatpush.msra.mxu0 0.0
    %357 = vmatpush.msra.mxu0 0.0
    %358 = vmatpush.msra.mxu0 0.0
    %359 = vmatpush.msra.mxu0 0.0
    %360 = vmatpush.msra.mxu0 0.0
    %361 = vmatpush.msra.mxu0 0.0
    %362 = vmatpush.msra.mxu0 0.0
    %363 = vmatpush.msra.mxu0 0.0
    %364 = vmatpush.msra.mxu0 0.0
    %365 = vmatpush.msra.mxu0 0.0
    %366 = vmatpush.msra.mxu0 0.0
    %367 = vmatpush.msra.mxu0 %v324
    %368 = vmatpush.msra.mxu0 %v323
    %369 = vmatpush.msra.mxu0 %v322
    %370 = vmatpush.msra.mxu0 %v321
    %371 = vmatmul.f32.gmra.mxu0 %v353
    %v372 = vpop.f32.mrf.mxu0
    %v373 = vadd.f32 %v350, %v372
    %374 = vdwg.mxu0
    %v375 = vperm.slane %v320, 0
    %v376 = vadd.f32 %v373, %v375
    %377 = vst [vmem:[#allocation13] sm:$0xff] %v376
    // Predicated region
    $region62: #{tpu_custom_call.1} parent=1 // pred_check
      _
    $region63: #{tpu_custom_call.1} parent=1 // pred_check_branch
      %379 = sbr.rel (0) target = $region65
    $region64: #{tpu_custom_call.1} parent=1 // pred_region
      %381 = vsyncadd [#allocation4], 0
      %s383 = sshll.u32 [#allocation13], 4
      %s384 = int_to_ptr.vmem [resolvable:$true] %s383
      %s385 = sshll.u32 %s9, 4
      %s386 = int_to_ptr.hbm [resolvable:$true] %s385
      %388 = dma.vmem_to_hbm [thread:$0]  %s384, 128, %s386, [#allocation4]
    $region65: #{tpu_custom_call.1} parent=1 // pred_fallthru
      _
    // Predicated region
    $region66: #{tpu_custom_call.1} parent=1 // pred_check
      _
    $region67: #{tpu_custom_call.1} parent=1 // pred_check_branch
      %390 = sbr.rel (0) target = $region69
    $region68: #{tpu_custom_call.1} parent=1 // pred_region
      %392 = dma.done [#allocation4], 128
    $region69: #{tpu_custom_call.1} parent=1 // pred_fallthru
      _
    %393 = vsyncpa [#allocation3], 1
    %394 = vsyncpa [#allocation6], 1
    %395 = vsyncpa [#allocation9], 1
    %396 = vsyncpa [#allocation12], 1
    %397 = vsyncpa [#allocation4], 1

</llo_original>
